<compile_context>
chip_gen: v7x
topology: tpu7x:2x2x1
jax: 0.10.0
libtpu: 0.0.40
codegen_flags: <defaults>
</compile_context>

<pallas_src>
import jax
import jax.numpy as jnp
from jax.experimental import pallas as pl
from jax.experimental.pallas import tpu as pltpu

IN_FEATURES = 4096
OUT_FEATURES = 10


def _model_kernel(x_ref, wt_ref, o_ref):
    """Single-shot kernel: whole operands resident in VMEM.

    x_ref : [M, K]  activations (K lane-dense)
    wt_ref: [N, K]  transposed weights (K lane-dense; Mosaic sublane-pads N)
    o_ref : [M, N]  relu(2 * (x @ w))
    """
    # Contract K (last axis of both operands) -> [M, N] on the MXU.
    y = jax.lax.dot_general(
        x_ref[...],
        wt_ref[...],
        dimension_numbers=(((1,), (1,)), ((), ())),
        preferred_element_type=jnp.float32,
    )
    y1 = y + y                                              # y + y
    o_ref[...] = jnp.maximum(y1, 0.0).astype(o_ref.dtype)   # relu


def init_params():
    """Init-time parameter prep (done once, NOT on the per-call path).

    Matches torch.ones(in_features, out_features), stored transposed so the
    long 4096 axis is lane-dense (contiguous 16 KiB HBM->VMEM DMA rows).
    """
    w = jnp.ones((IN_FEATURES, OUT_FEATURES), dtype=jnp.float32)   # [K, N]
    wt = jnp.asarray(w.T)                                          # [N, K]
    return wt


@jax.jit
def model_forward(x, wt):
    """x: [M, K] f32, wt: [N, K] f32 (pre-transposed) -> relu(2*(x @ wt.T))."""
    M, K = x.shape
    N, Kw = wt.shape
    assert K == Kw

    return pl.pallas_call(
        _model_kernel,
        out_shape=jax.ShapeDtypeStruct((M, N), jnp.float32),
        # Whole arrays resident in VMEM: no grid, no pipelining overhead.
        in_specs=[
            pl.BlockSpec(memory_space=pltpu.MemorySpace.VMEM),
            pl.BlockSpec(memory_space=pltpu.MemorySpace.VMEM),
        ],
        out_specs=pl.BlockSpec(memory_space=pltpu.MemorySpace.VMEM),
        cost_estimate=pl.CostEstimate(
            flops=2 * M * K * N,
            transcendentals=0,
            bytes_accessed=(M * K + N * K + M * N) * 4,
        ),
    )(x, wt)


if __name__ == "__main__":
    BATCH = 2  # small batch; matmul requires last dim == in_features

    key = jax.random.PRNGKey(0)
    x = jax.random.normal(key, (BATCH, IN_FEATURES), dtype=jnp.float32)

    # Init-time (one-off) weight preparation — hoisted out of the forward path.
    wt = init_params()
    wt = jax.block_until_ready(wt)

    out = model_forward(x, wt)
    out = jax.block_until_ready(out)

    # Reference check in plain JAX (original layout: W = [K, N] = ones).
    w_ref = jnp.ones((IN_FEATURES, OUT_FEATURES), dtype=jnp.float32)
    ref = jnp.maximum(2.0 * (x @ w_ref), 0.0)
    assert out.shape == (BATCH, OUT_FEATURES)
    assert jnp.allclose(out, ref, rtol=1e-5, atol=1e-5)

    print("KERNEL_OK")
</pallas_src>

<mosaic_0001>
module attributes {stable_mosaic.version = 11 : i64} {
  func.func @_model_kernel(%arg0: memref<2x4096xf32, #tpu.memory_space<vmem>>, %arg1: memref<10x4096xf32, #tpu.memory_space<vmem>>, %arg2: memref<2x10xf32, #tpu.memory_space<vmem>>) attributes {dimension_semantics = [], scalar_prefetch = 0 : i64, scratch_operands = 0 : i64, tpu.core_type = #tpu.core_type<tc>} {
    %c0 = arith.constant 0 : index
    %c0_0 = arith.constant 0 : index
    %0 = vector.load %arg0[%c0, %c0_0] : memref<2x4096xf32, #tpu.memory_space<vmem>>, vector<2x4096xf32>
    %c0_1 = arith.constant 0 : index
    %c0_2 = arith.constant 0 : index
    %1 = vector.load %arg1[%c0_1, %c0_2] : memref<10x4096xf32, #tpu.memory_space<vmem>>, vector<10x4096xf32>
    %cst = arith.constant dense<0.000000e+00> : vector<2x10xf32>
    %2 = tpu.matmul %0, %1, %cst {dimension_numbers = #tpu.dot_dimension_numbers<[1], [1], [0], [0], [0, 0, 1, 0], [], []>} : vector<2x4096xf32>, vector<10x4096xf32>, vector<2x10xf32> -> vector<2x10xf32>
    %3 = arith.addf %2, %2 : vector<2x10xf32>
    %cst_3 = arith.constant 0.000000e+00 : f32
    %4 = vector.broadcast %cst_3 : f32 to vector<2x10xf32>
    %5 = arith.maximumf %3, %4 : vector<2x10xf32>
    %c0_4 = arith.constant 0 : index
    %c0_5 = arith.constant 0 : index
    %6 = vector.load %arg2[%c0_4, %c0_5] : memref<2x10xf32, #tpu.memory_space<vmem>>, vector<2x10xf32>
    tpu.vector_store %arg2[%c0_4, %c0_5], %5 {strides = array<i32>} : memref<2x10xf32, #tpu.memory_space<vmem>>, vector<2x10xf32>,
    return
  }
}

</mosaic_0001>

<llo_original>
// kernel: model_forward.1
$region0: #{model_forward.1}
  #allocation0 [shape = 'u32[]', space=smem, size = 0x4, offset = 0x4, fixed_abs, tag = 'smem constant byte address 0x4 - core index']
  #allocation1 [shape = 'u32[144,128]{1,0:T(1,128)}', space=vmem, size = 0x12000, scoped, tag = 'internal scratch']
  %s0 = inlined_call_operand.hbm [shape: f32[2,4096], index: 0, kind: input, shape index: {}]
  %s1 = inlined_call_operand.hbm [shape: f32[10,4096], index: 1, kind: input, shape index: {}]
  %s2 = inlined_call_operand.hbm [shape: f32[2,10], index: 2, kind: output, shape index: {}]
  %s3 = sld [smem:[#allocation0]]
  $region26: #{model_forward.1} parent=0
    _
  %s5 = ssub.s32 1, %s3
  %s6 = scalar_select 0, %s5, %s3
  $region1: #{model_forward.1} parent=0
    #allocation2 [shape = 'u8[32768]{0}', space=vmem, size = 0x8000, scoped, tag = 'input window, operand 0, single buffered']
    #allocation3 [shape = 's32[1]{0}', space=sflag, size = 0x4, scoped, tag = 'scoped memory for model_forward.1']
    #allocation4 [shape = 's32[1]{0}', space=sflag, size = 0x4, scoped, tag = 'scoped memory for model_forward.1']
    #allocation5 [shape = 'u8[262144]{0}', space=vmem, size = 0x40000, scoped, tag = 'input window, operand 1, single buffered']
    #allocation6 [shape = 's32[1]{0}', space=sflag, size = 0x4, scoped, tag = 'scoped memory for model_forward.1']
    #allocation7 [shape = 'u8[1024]{0}', space=vmem, size = 0x400, scoped, tag = 'output window, operand 0, single buffered']
    %7 = vsyncpa [#allocation3], 0
    %8 = vsyncpa [#allocation6], 0
    %9 = vsyncpa [#allocation4], 0
    // Predicated region
    $region2: #{model_forward.1} parent=1 // pred_check
      _
    $region3: #{model_forward.1} parent=1 // pred_check_branch
      %11 = sbr.rel (0) target = $region5
    $region4: #{model_forward.1} parent=1 // pred_region
      %s13 = ssub.s32 1024, 1024
      %14 = vsyncadd [#allocation3], %s13
      %s16 = sshll.u32 [#allocation2], 4
      %s17 = int_to_ptr.vmem [resolvable:$true] %s16
      %19 = dma.hbm_to_vmem [thread:$0]  %s0, 1024, %s17, [#allocation3]
    $region5: #{model_forward.1} parent=1 // pred_fallthru
      _
    // Predicated region
    $region6: #{model_forward.1} parent=1 // pred_check
      _
    $region7: #{model_forward.1} parent=1 // pred_check_branch
      %21 = sbr.rel (0) target = $region9
    $region8: #{model_forward.1} parent=1 // pred_region
      %s23 = ssub.s32 8192, 8192
      %24 = vsyncadd [#allocation6], %s23
      %s25 = sshll.u32 [#allocation5], 4
      %s26 = int_to_ptr.vmem [resolvable:$true] %s25
      %31 = dma.hbm_to_vmem [thread:$0]  %s1, 8192, %s26, [#allocation6], 4096, 4096, 256
    $region9: #{model_forward.1} parent=1 // pred_fallthru
      _
    // Predicated region
    $region10: #{model_forward.1} parent=1 // pred_check
      _
    $region11: #{model_forward.1} parent=1 // pred_check_branch
      %33 = sbr.rel (0) target = $region13
    $region12: #{model_forward.1} parent=1 // pred_region
      %34 = dma.done [#allocation3], 1024
    $region13: #{model_forward.1} parent=1 // pred_fallthru
      _
    // Predicated region
    $region14: #{model_forward.1} parent=1 // pred_check
      _
    $region15: #{model_forward.1} parent=1 // pred_check_branch
      %36 = sbr.rel (0) target = $region17
    $region16: #{model_forward.1} parent=1 // pred_region
      %37 = dma.done [#allocation6], 8192
    $region17: #{model_forward.1} parent=1 // pred_fallthru
      _
    %v38 = vld [vmem:[#allocation2] sm:$0xff]
    %v39 = vld [vmem:[#allocation2 + $0x8] sm:$0xff]
    %v40 = vld [vmem:[#allocation2 + $0x10] sm:$0xff]
    %v41 = vld [vmem:[#allocation2 + $0x18] sm:$0xff]
    %v42 = vld [vmem:[#allocation2 + $0x20] sm:$0xff]
    %v43 = vld [vmem:[#allocation2 + $0x28] sm:$0xff]
    %v44 = vld [vmem:[#allocation2 + $0x30] sm:$0xff]
    %v45 = vld [vmem:[#allocation2 + $0x38] sm:$0xff]
    %v46 = vld [vmem:[#allocation5] sm:$0xff]
    %v47 = vld [vmem:[#allocation5 + $0x8] sm:$0xff]
    %v48 = vld [vmem:[#allocation5 + $0x10] sm:$0xff]
    %v49 = vld [vmem:[#allocation5 + $0x18] sm:$0xff]
    %v50 = vld [vmem:[#allocation5 + $0x20] sm:$0xff]
    %v51 = vld [vmem:[#allocation5 + $0x28] sm:$0xff]
    %v52 = vld [vmem:[#allocation5 + $0x30] sm:$0xff]
    %v53 = vld [vmem:[#allocation5 + $0x38] sm:$0xff]
    %v54 = vld [vmem:[#allocation5 + $0x40] sm:$0xff]
    %v55 = vld [vmem:[#allocation5 + $0x48] sm:$0xff]
    %v56 = vld [vmem:[#allocation5 + $0x50] sm:$0xff]
    %v57 = vld [vmem:[#allocation5 + $0x58] sm:$0xff]
    %v58 = vld [vmem:[#allocation5 + $0x60] sm:$0xff]
    %v59 = vld [vmem:[#allocation5 + $0x68] sm:$0xff]
    %v60 = vld [vmem:[#allocation5 + $0x70] sm:$0xff]
    %v61 = vld [vmem:[#allocation5 + $0x78] sm:$0xff]
    %v62 = vld [vmem:[#allocation5 + $0x80] sm:$0xff]
    %v63 = vld [vmem:[#allocation5 + $0x88] sm:$0xff]
    %v64 = vld [vmem:[#allocation5 + $0x90] sm:$0xff]
    %v65 = vld [vmem:[#allocation5 + $0x98] sm:$0xff]
    %v66 = vld [vmem:[#allocation5 + $0xa0] sm:$0xff]
    %v67 = vld [vmem:[#allocation5 + $0xa8] sm:$0xff]
    %v68 = vld [vmem:[#allocation5 + $0xb0] sm:$0xff]
    %v69 = vld [vmem:[#allocation5 + $0xb8] sm:$0xff]
    %v70 = vld [vmem:[#allocation5 + $0xc0] sm:$0xff]
    %v71 = vld [vmem:[#allocation5 + $0xc8] sm:$0xff]
    %v72 = vld [vmem:[#allocation5 + $0xd0] sm:$0xff]
    %v73 = vld [vmem:[#allocation5 + $0xd8] sm:$0xff]
    %v74 = vld [vmem:[#allocation5 + $0xe0] sm:$0xff]
    %v75 = vld [vmem:[#allocation5 + $0xe8] sm:$0xff]
    %v76 = vld [vmem:[#allocation5 + $0xf0] sm:$0xff]
    %v77 = vld [vmem:[#allocation5 + $0xf8] sm:$0xff]
    %v78 = vld [vmem:[#allocation5 + $0x100] sm:$0x3]
    %v79 = vld [vmem:[#allocation5 + $0x108] sm:$0x3]
    %v80 = vld [vmem:[#allocation5 + $0x110] sm:$0x3]
    %v81 = vld [vmem:[#allocation5 + $0x118] sm:$0x3]
    %v82 = vld [vmem:[#allocation5 + $0x120] sm:$0x3]
    %v83 = vld [vmem:[#allocation5 + $0x128] sm:$0x3]
    %v84 = vld [vmem:[#allocation5 + $0x130] sm:$0x3]
    %v85 = vld [vmem:[#allocation5 + $0x138] sm:$0x3]
    %v86 = vld [vmem:[#allocation5 + $0x140] sm:$0x3]
    %v87 = vld [vmem:[#allocation5 + $0x148] sm:$0x3]
    %v88 = vld [vmem:[#allocation5 + $0x150] sm:$0x3]
    %v89 = vld [vmem:[#allocation5 + $0x158] sm:$0x3]
    %v90 = vld [vmem:[#allocation5 + $0x160] sm:$0x3]
    %v91 = vld [vmem:[#allocation5 + $0x168] sm:$0x3]
    %v92 = vld [vmem:[#allocation5 + $0x170] sm:$0x3]
    %v93 = vld [vmem:[#allocation5 + $0x178] sm:$0x3]
    %v94 = vld [vmem:[#allocation5 + $0x180] sm:$0x3]
    %v95 = vld [vmem:[#allocation5 + $0x188] sm:$0x3]
    %v96 = vld [vmem:[#allocation5 + $0x190] sm:$0x3]
    %v97 = vld [vmem:[#allocation5 + $0x198] sm:$0x3]
    %v98 = vld [vmem:[#allocation5 + $0x1a0] sm:$0x3]
    %v99 = vld [vmem:[#allocation5 + $0x1a8] sm:$0x3]
    %v100 = vld [vmem:[#allocation5 + $0x1b0] sm:$0x3]
    %v101 = vld [vmem:[#allocation5 + $0x1b8] sm:$0x3]
    %v102 = vld [vmem:[#allocation5 + $0x1c0] sm:$0x3]
    %v103 = vld [vmem:[#allocation5 + $0x1c8] sm:$0x3]
    %v104 = vld [vmem:[#allocation5 + $0x1d0] sm:$0x3]
    %v105 = vld [vmem:[#allocation5 + $0x1d8] sm:$0x3]
    %v106 = vld [vmem:[#allocation5 + $0x1e0] sm:$0x3]
    %v107 = vld [vmem:[#allocation5 + $0x1e8] sm:$0x3]
    %v108 = vld [vmem:[#allocation5 + $0x1f0] sm:$0x3]
    %v109 = vld [vmem:[#allocation5 + $0x1f8] sm:$0x3]
    %v118 = vcombine.high %v38, %v38
    %v120 = vunpack.c.l.s4 1983009808
    %v121 = vunpack.c.0.s8 %v120
    %v122 = vlaneseq
    %v123 = vshrl.u32 %v122, 7
    %v124 = vsub.s32 %v121, %v123
    %v125 = vrot.slane %v38, %v124
    %v127 = vunpack.c.l.s4 1983009808
    %v128 = vunpack.c.0.s8 %v127
    %v129 = vlaneseq
    %v130 = vshrl.u32 %v129, 7
    %v131 = vsub.s32 %v128, %v130
    %v132 = vrot.slane %v118, %v131
    %v133 = vcombine.high %v125, %v125
    %v134 = vcombine.high %v132, %v132
    %v135 = vcombine.high %v39, %v39
    %v137 = vunpack.c.l.s4 1983009808
    %v138 = vunpack.c.0.s8 %v137
    %v139 = vlaneseq
    %v140 = vshrl.u32 %v139, 7
    %v141 = vsub.s32 %v138, %v140
    %v142 = vrot.slane %v39, %v141
    %v144 = vunpack.c.l.s4 1983009808
    %v145 = vunpack.c.0.s8 %v144
    %v146 = vlaneseq
    %v147 = vshrl.u32 %v146, 7
    %v148 = vsub.s32 %v145, %v147
    %v149 = vrot.slane %v135, %v148
    %v150 = vcombine.high %v142, %v142
    %v151 = vcombine.high %v149, %v149
    %v152 = vcombine.high %v40, %v40
    %v154 = vunpack.c.l.s4 1983009808
    %v155 = vunpack.c.0.s8 %v154
    %v156 = vlaneseq
    %v157 = vshrl.u32 %v156, 7
    %v158 = vsub.s32 %v155, %v157
    %v159 = vrot.slane %v40, %v158
    %v161 = vunpack.c.l.s4 1983009808
    %v162 = vunpack.c.0.s8 %v161
    %v163 = vlaneseq
    %v164 = vshrl.u32 %v163, 7
    %v165 = vsub.s32 %v162, %v164
    %v166 = vrot.slane %v152, %v165
    %v167 = vcombine.high %v159, %v159
    %v168 = vcombine.high %v166, %v166
    %v169 = vcombine.high %v41, %v41
    %v171 = vunpack.c.l.s4 1983009808
    %v172 = vunpack.c.0.s8 %v171
    %v173 = vlaneseq
    %v174 = vshrl.u32 %v173, 7
    %v175 = vsub.s32 %v172, %v174
    %v176 = vrot.slane %v41, %v175
    %v178 = vunpack.c.l.s4 1983009808
    %v179 = vunpack.c.0.s8 %v178
    %v180 = vlaneseq
    %v181 = vshrl.u32 %v180, 7
    %v182 = vsub.s32 %v179, %v181
    %v183 = vrot.slane %v169, %v182
    %v184 = vcombine.high %v176, %v176
    %v185 = vcombine.high %v183, %v183
    %v186 = vcombine.high %v42, %v42
    %v188 = vunpack.c.l.s4 1983009808
    %v189 = vunpack.c.0.s8 %v188
    %v190 = vlaneseq
    %v191 = vshrl.u32 %v190, 7
    %v192 = vsub.s32 %v189, %v191
    %v193 = vrot.slane %v42, %v192
    %v195 = vunpack.c.l.s4 1983009808
    %v196 = vunpack.c.0.s8 %v195
    %v197 = vlaneseq
    %v198 = vshrl.u32 %v197, 7
    %v199 = vsub.s32 %v196, %v198
    %v200 = vrot.slane %v186, %v199
    %v201 = vcombine.high %v193, %v193
    %v202 = vcombine.high %v200, %v200
    %v203 = vcombine.high %v43, %v43
    %v205 = vunpack.c.l.s4 1983009808
    %v206 = vunpack.c.0.s8 %v205
    %v207 = vlaneseq
    %v208 = vshrl.u32 %v207, 7
    %v209 = vsub.s32 %v206, %v208
    %v210 = vrot.slane %v43, %v209
    %v212 = vunpack.c.l.s4 1983009808
    %v213 = vunpack.c.0.s8 %v212
    %v214 = vlaneseq
    %v215 = vshrl.u32 %v214, 7
    %v216 = vsub.s32 %v213, %v215
    %v217 = vrot.slane %v203, %v216
    %v218 = vcombine.high %v210, %v210
    %v219 = vcombine.high %v217, %v217
    %v220 = vcombine.high %v44, %v44
    %v222 = vunpack.c.l.s4 1983009808
    %v223 = vunpack.c.0.s8 %v222
    %v224 = vlaneseq
    %v225 = vshrl.u32 %v224, 7
    %v226 = vsub.s32 %v223, %v225
    %v227 = vrot.slane %v44, %v226
    %v229 = vunpack.c.l.s4 1983009808
    %v230 = vunpack.c.0.s8 %v229
    %v231 = vlaneseq
    %v232 = vshrl.u32 %v231, 7
    %v233 = vsub.s32 %v230, %v232
    %v234 = vrot.slane %v220, %v233
    %v235 = vcombine.high %v227, %v227
    %v236 = vcombine.high %v234, %v234
    %v237 = vcombine.high %v45, %v45
    %v239 = vunpack.c.l.s4 1983009808
    %v240 = vunpack.c.0.s8 %v239
    %v241 = vlaneseq
    %v242 = vshrl.u32 %v241, 7
    %v243 = vsub.s32 %v240, %v242
    %v244 = vrot.slane %v45, %v243
    %v246 = vunpack.c.l.s4 1983009808
    %v247 = vunpack.c.0.s8 %v246
    %v248 = vlaneseq
    %v249 = vshrl.u32 %v248, 7
    %v250 = vsub.s32 %v247, %v249
    %v251 = vrot.slane %v237, %v250
    %v252 = vcombine.high %v244, %v244
    %v253 = vcombine.high %v251, %v251
    %286 = vmatprep.subr.mxu0 %v47
    %287 = vmatpush1.xpose.msra.mxu0 %v46
    %288 = vmatprep.subr.mxu0 %v79
    %289 = vmatpush1.xpose.msra.mxu0 %v78
    %290 = vmatprep.subr.mxu0 0.0
    %291 = vmatpush1.xpose.msra.mxu0 0.0
    %292 = vmatprep.subr.mxu0 0.0
    %293 = vmatpush1.xpose.msra.mxu0 0.0
    %294 = vmatprep.subr.mxu0 0.0
    %295 = vmatpush1.xpose.msra.mxu0 0.0
    %296 = vmatprep.subr.mxu0 0.0
    %297 = vmatpush1.xpose.msra.mxu0 0.0
    %298 = vmatprep.subr.mxu0 0.0
    %299 = vmatpush1.xpose.msra.mxu0 0.0
    %300 = vmatprep.subr.mxu0 0.0
    %301 = vmatpush1.xpose.msra.mxu0 0.0
    %302 = vmatprep.subr.mxu0 0.0
    %303 = vmatpush1.xpose.msra.mxu0 0.0
    %304 = vmatprep.subr.mxu0 0.0
    %305 = vmatpush1.xpose.msra.mxu0 0.0
    %306 = vmatprep.subr.mxu0 0.0
    %307 = vmatpush1.xpose.msra.mxu0 0.0
    %308 = vmatprep.subr.mxu0 0.0
    %309 = vmatpush1.xpose.msra.mxu0 0.0
    %310 = vmatprep.subr.mxu0 0.0
    %311 = vmatpush1.xpose.msra.mxu0 0.0
    %312 = vmatprep.subr.mxu0 0.0
    %313 = vmatpush1.xpose.msra.mxu0 0.0
    %314 = vmatprep.subr.mxu0 0.0
    %315 = vmatpush1.xpose.msra.mxu0 0.0
    %316 = vmatprep.subr.mxu0 0.0
    %317 = vmatpush1.xpose.msra.mxu0 0.0
    %318 = vmatprep.subr.mxu0 0.0
    %319 = vmatpush1.xpose.msra.mxu0 0.0
    %320 = vmatprep.subr.mxu0 0.0
    %321 = vmatpush1.xpose.msra.mxu0 0.0
    %322 = vmatprep.subr.mxu0 0.0
    %323 = vmatpush1.xpose.msra.mxu0 0.0
    %324 = vmatprep.subr.mxu0 0.0
    %325 = vmatpush1.xpose.msra.mxu0 0.0
    %326 = vmatprep.subr.mxu0 0.0
    %327 = vmatpush1.xpose.msra.mxu0 0.0
    %328 = vmatprep.subr.mxu0 0.0
    %329 = vmatpush1.xpose.msra.mxu0 0.0
    %330 = vmatprep.subr.mxu0 0.0
    %331 = vmatpush1.xpose.msra.mxu0 0.0
    %332 = vmatprep.subr.mxu0 0.0
    %333 = vmatpush1.xpose.msra.mxu0 0.0
    %334 = vmatprep.subr.mxu0 0.0
    %335 = vmatpush1.xpose.msra.mxu0 0.0
    %336 = vmatprep.subr.mxu0 0.0
    %337 = vmatpush1.xpose.msra.mxu0 0.0
    %338 = vmatprep.subr.mxu0 0.0
    %339 = vmatpush1.xpose.msra.mxu0 0.0
    %340 = vmatprep.subr.mxu0 0.0
    %341 = vmatpush1.xpose.msra.mxu0 0.0
    %342 = vmatprep.subr.mxu0 0.0
    %343 = vmatpush1.xpose.msra.mxu0 0.0
    %344 = vmatprep.subr.mxu0 0.0
    %345 = vmatpush1.xpose.msra.mxu0 0.0
    %346 = vmatprep.subr.mxu0 0.0
    %347 = vmatpush1.xpose.msra.mxu0 0.0
    %348 = vmatprep.subr.mxu0 0.0
    %349 = vmatpush1.xpose.msra.mxu0 0.0
    %350 = vmatprep.mubr.f32.mxu0 %v133
    %351 = vmatmul.mubr.f32.gmra.mrb[0].mxu0 %v125
    %v352 = vpop.f32.mrb[0].mxu0
    %v353 = vadd.f32 0.0, %v352
    %v354 = vpop.f32.mrb[0].mxu0
    %355 = vdwg.mxu0
    %356 = vmatprep.subr.mxu0 %v49
    %357 = vmatpush1.xpose.msra.mxu0 %v48
    %358 = vmatprep.subr.mxu0 %v81
    %359 = vmatpush1.xpose.msra.mxu0 %v80
    %360 = vmatprep.subr.mxu0 0.0
    %361 = vmatpush1.xpose.msra.mxu0 0.0
    %362 = vmatprep.subr.mxu0 0.0
    %363 = vmatpush1.xpose.msra.mxu0 0.0
    %364 = vmatprep.subr.mxu0 0.0
    %365 = vmatpush1.xpose.msra.mxu0 0.0
    %366 = vmatprep.subr.mxu0 0.0
    %367 = vmatpush1.xpose.msra.mxu0 0.0
    %368 = vmatprep.subr.mxu0 0.0
    %369 = vmatpush1.xpose.msra.mxu0 0.0
    %370 = vmatprep.subr.mxu0 0.0
    %371 = vmatpush1.xpose.msra.mxu0 0.0
    %372 = vmatprep.subr.mxu0 0.0
    %373 = vmatpush1.xpose.msra.mxu0 0.0
    %374 = vmatprep.subr.mxu0 0.0
    %375 = vmatpush1.xpose.msra.mxu0 0.0
    %376 = vmatprep.subr.mxu0 0.0
    %377 = vmatpush1.xpose.msra.mxu0 0.0
    %378 = vmatprep.subr.mxu0 0.0
    %379 = vmatpush1.xpose.msra.mxu0 0.0
    %380 = vmatprep.subr.mxu0 0.0
    %381 = vmatpush1.xpose.msra.mxu0 0.0
    %382 = vmatprep.subr.mxu0 0.0
    %383 = vmatpush1.xpose.msra.mxu0 0.0
    %384 = vmatprep.subr.mxu0 0.0
    %385 = vmatpush1.xpose.msra.mxu0 0.0
    %386 = vmatprep.subr.mxu0 0.0
    %387 = vmatpush1.xpose.msra.mxu0 0.0
    %388 = vmatprep.subr.mxu0 0.0
    %389 = vmatpush1.xpose.msra.mxu0 0.0
    %390 = vmatprep.subr.mxu0 0.0
    %391 = vmatpush1.xpose.msra.mxu0 0.0
    %392 = vmatprep.subr.mxu0 0.0
    %393 = vmatpush1.xpose.msra.mxu0 0.0
    %394 = vmatprep.subr.mxu0 0.0
    %395 = vmatpush1.xpose.msra.mxu0 0.0
    %396 = vmatprep.subr.mxu0 0.0
    %397 = vmatpush1.xpose.msra.mxu0 0.0
    %398 = vmatprep.subr.mxu0 0.0
    %399 = vmatpush1.xpose.msra.mxu0 0.0
    %400 = vmatprep.subr.mxu0 0.0
    %401 = vmatpush1.xpose.msra.mxu0 0.0
    %402 = vmatprep.subr.mxu0 0.0
    %403 = vmatpush1.xpose.msra.mxu0 0.0
    %404 = vmatprep.subr.mxu0 0.0
    %405 = vmatpush1.xpose.msra.mxu0 0.0
    %406 = vmatprep.subr.mxu0 0.0
    %407 = vmatpush1.xpose.msra.mxu0 0.0
    %408 = vmatprep.subr.mxu0 0.0
    %409 = vmatpush1.xpose.msra.mxu0 0.0
    %410 = vmatprep.subr.mxu0 0.0
    %411 = vmatpush1.xpose.msra.mxu0 0.0
    %412 = vmatprep.subr.mxu0 0.0
    %413 = vmatpush1.xpose.msra.mxu0 0.0
    %414 = vmatprep.subr.mxu0 0.0
    %415 = vmatpush1.xpose.msra.mxu0 0.0
    %416 = vmatprep.subr.mxu0 0.0
    %417 = vmatpush1.xpose.msra.mxu0 0.0
    %418 = vmatprep.subr.mxu0 0.0
    %419 = vmatpush1.xpose.msra.mxu0 0.0
    %420 = vmatprep.mubr.f32.mxu0 %v134
    %421 = vmatmul.mubr.f32.gmra.mrb[0].mxu0 %v132
    %v422 = vpop.f32.mrb[0].mxu0
    %v423 = vadd.f32 %v353, %v422
    %v424 = vpop.f32.mrb[0].mxu0
    %425 = vdwg.mxu0
    %426 = vmatprep.subr.mxu0 %v51
    %427 = vmatpush1.xpose.msra.mxu0 %v50
    %428 = vmatprep.subr.mxu0 %v83
    %429 = vmatpush1.xpose.msra.mxu0 %v82
    %430 = vmatprep.subr.mxu0 0.0
    %431 = vmatpush1.xpose.msra.mxu0 0.0
    %432 = vmatprep.subr.mxu0 0.0
    %433 = vmatpush1.xpose.msra.mxu0 0.0
    %434 = vmatprep.subr.mxu0 0.0
    %435 = vmatpush1.xpose.msra.mxu0 0.0
    %436 = vmatprep.subr.mxu0 0.0
    %437 = vmatpush1.xpose.msra.mxu0 0.0
    %438 = vmatprep.subr.mxu0 0.0
    %439 = vmatpush1.xpose.msra.mxu0 0.0
    %440 = vmatprep.subr.mxu0 0.0
    %441 = vmatpush1.xpose.msra.mxu0 0.0
    %442 = vmatprep.subr.mxu0 0.0
    %443 = vmatpush1.xpose.msra.mxu0 0.0
    %444 = vmatprep.subr.mxu0 0.0
    %445 = vmatpush1.xpose.msra.mxu0 0.0
    %446 = vmatprep.subr.mxu0 0.0
    %447 = vmatpush1.xpose.msra.mxu0 0.0
    %448 = vmatprep.subr.mxu0 0.0
    %449 = vmatpush1.xpose.msra.mxu0 0.0
    %450 = vmatprep.subr.mxu0 0.0
    %451 = vmatpush1.xpose.msra.mxu0 0.0
    %452 = vmatprep.subr.mxu0 0.0
    %453 = vmatpush1.xpose.msra.mxu0 0.0
    %454 = vmatprep.subr.mxu0 0.0
    %455 = vmatpush1.xpose.msra.mxu0 0.0
    %456 = vmatprep.subr.mxu0 0.0
    %457 = vmatpush1.xpose.msra.mxu0 0.0
    %458 = vmatprep.subr.mxu0 0.0
    %459 = vmatpush1.xpose.msra.mxu0 0.0
    %460 = vmatprep.subr.mxu0 0.0
    %461 = vmatpush1.xpose.msra.mxu0 0.0
    %462 = vmatprep.subr.mxu0 0.0
    %463 = vmatpush1.xpose.msra.mxu0 0.0
    %464 = vmatprep.subr.mxu0 0.0
    %465 = vmatpush1.xpose.msra.mxu0 0.0
    %466 = vmatprep.subr.mxu0 0.0
    %467 = vmatpush1.xpose.msra.mxu0 0.0
    %468 = vmatprep.subr.mxu0 0.0
    %469 = vmatpush1.xpose.msra.mxu0 0.0
    %470 = vmatprep.subr.mxu0 0.0
    %471 = vmatpush1.xpose.msra.mxu0 0.0
    %472 = vmatprep.subr.mxu0 0.0
    %473 = vmatpush1.xpose.msra.mxu0 0.0
    %474 = vmatprep.subr.mxu0 0.0
    %475 = vmatpush1.xpose.msra.mxu0 0.0
    %476 = vmatprep.subr.mxu0 0.0
    %477 = vmatpush1.xpose.msra.mxu0 0.0
    %478 = vmatprep.subr.mxu0 0.0
    %479 = vmatpush1.xpose.msra.mxu0 0.0
    %480 = vmatprep.subr.mxu0 0.0
    %481 = vmatpush1.xpose.msra.mxu0 0.0
    %482 = vmatprep.subr.mxu0 0.0
    %483 = vmatpush1.xpose.msra.mxu0 0.0
    %484 = vmatprep.subr.mxu0 0.0
    %485 = vmatpush1.xpose.msra.mxu0 0.0
    %486 = vmatprep.subr.mxu0 0.0
    %487 = vmatpush1.xpose.msra.mxu0 0.0
    %488 = vmatprep.subr.mxu0 0.0
    %489 = vmatpush1.xpose.msra.mxu0 0.0
    %490 = vmatprep.mubr.f32.mxu0 %v150
    %491 = vmatmul.mubr.f32.gmra.mrb[0].mxu0 %v142
    %v492 = vpop.f32.mrb[0].mxu0
    %v493 = vadd.f32 %v423, %v492
    %v494 = vpop.f32.mrb[0].mxu0
    %495 = vdwg.mxu0
    %496 = vmatprep.subr.mxu0 %v53
    %497 = vmatpush1.xpose.msra.mxu0 %v52
    %498 = vmatprep.subr.mxu0 %v85
    %499 = vmatpush1.xpose.msra.mxu0 %v84
    %500 = vmatprep.subr.mxu0 0.0
    %501 = vmatpush1.xpose.msra.mxu0 0.0
    %502 = vmatprep.subr.mxu0 0.0
    %503 = vmatpush1.xpose.msra.mxu0 0.0
    %504 = vmatprep.subr.mxu0 0.0
    %505 = vmatpush1.xpose.msra.mxu0 0.0
    %506 = vmatprep.subr.mxu0 0.0
    %507 = vmatpush1.xpose.msra.mxu0 0.0
    %508 = vmatprep.subr.mxu0 0.0
    %509 = vmatpush1.xpose.msra.mxu0 0.0
    %510 = vmatprep.subr.mxu0 0.0
    %511 = vmatpush1.xpose.msra.mxu0 0.0
    %512 = vmatprep.subr.mxu0 0.0
    %513 = vmatpush1.xpose.msra.mxu0 0.0
    %514 = vmatprep.subr.mxu0 0.0
    %515 = vmatpush1.xpose.msra.mxu0 0.0
    %516 = vmatprep.subr.mxu0 0.0
    %517 = vmatpush1.xpose.msra.mxu0 0.0
    %518 = vmatprep.subr.mxu0 0.0
    %519 = vmatpush1.xpose.msra.mxu0 0.0
    %520 = vmatprep.subr.mxu0 0.0
    %521 = vmatpush1.xpose.msra.mxu0 0.0
    %522 = vmatprep.subr.mxu0 0.0
    %523 = vmatpush1.xpose.msra.mxu0 0.0
    %524 = vmatprep.subr.mxu0 0.0
    %525 = vmatpush1.xpose.msra.mxu0 0.0
    %526 = vmatprep.subr.mxu0 0.0
    %527 = vmatpush1.xpose.msra.mxu0 0.0
    %528 = vmatprep.subr.mxu0 0.0
    %529 = vmatpush1.xpose.msra.mxu0 0.0
    %530 = vmatprep.subr.mxu0 0.0
    %531 = vmatpush1.xpose.msra.mxu0 0.0
    %532 = vmatprep.subr.mxu0 0.0
    %533 = vmatpush1.xpose.msra.mxu0 0.0
    %534 = vmatprep.subr.mxu0 0.0
    %535 = vmatpush1.xpose.msra.mxu0 0.0
    %536 = vmatprep.subr.mxu0 0.0
    %537 = vmatpush1.xpose.msra.mxu0 0.0
    %538 = vmatprep.subr.mxu0 0.0
    %539 = vmatpush1.xpose.msra.mxu0 0.0
    %540 = vmatprep.subr.mxu0 0.0
    %541 = vmatpush1.xpose.msra.mxu0 0.0
    %542 = vmatprep.subr.mxu0 0.0
    %543 = vmatpush1.xpose.msra.mxu0 0.0
    %544 = vmatprep.subr.mxu0 0.0
    %545 = vmatpush1.xpose.msra.mxu0 0.0
    %546 = vmatprep.subr.mxu0 0.0
    %547 = vmatpush1.xpose.msra.mxu0 0.0
    %548 = vmatprep.subr.mxu0 0.0
    %549 = vmatpush1.xpose.msra.mxu0 0.0
    %550 = vmatprep.subr.mxu0 0.0
    %551 = vmatpush1.xpose.msra.mxu0 0.0
    %552 = vmatprep.subr.mxu0 0.0
    %553 = vmatpush1.xpose.msra.mxu0 0.0
    %554 = vmatprep.subr.mxu0 0.0
    %555 = vmatpush1.xpose.msra.mxu0 0.0
    %556 = vmatprep.subr.mxu0 0.0
    %557 = vmatpush1.xpose.msra.mxu0 0.0
    %558 = vmatprep.subr.mxu0 0.0
    %559 = vmatpush1.xpose.msra.mxu0 0.0
    %560 = vmatprep.mubr.f32.mxu0 %v151
    %561 = vmatmul.mubr.f32.gmra.mrb[0].mxu0 %v149
    %v562 = vpop.f32.mrb[0].mxu0
    %v563 = vadd.f32 %v493, %v562
    %v564 = vpop.f32.mrb[0].mxu0
    %565 = vdwg.mxu0
    %566 = vmatprep.subr.mxu0 %v55
    %567 = vmatpush1.xpose.msra.mxu0 %v54
    %568 = vmatprep.subr.mxu0 %v87
    %569 = vmatpush1.xpose.msra.mxu0 %v86
    %570 = vmatprep.subr.mxu0 0.0
    %571 = vmatpush1.xpose.msra.mxu0 0.0
    %572 = vmatprep.subr.mxu0 0.0
    %573 = vmatpush1.xpose.msra.mxu0 0.0
    %574 = vmatprep.subr.mxu0 0.0
    %575 = vmatpush1.xpose.msra.mxu0 0.0
    %576 = vmatprep.subr.mxu0 0.0
    %577 = vmatpush1.xpose.msra.mxu0 0.0
    %578 = vmatprep.subr.mxu0 0.0
    %579 = vmatpush1.xpose.msra.mxu0 0.0
    %580 = vmatprep.subr.mxu0 0.0
    %581 = vmatpush1.xpose.msra.mxu0 0.0
    %582 = vmatprep.subr.mxu0 0.0
    %583 = vmatpush1.xpose.msra.mxu0 0.0
    %584 = vmatprep.subr.mxu0 0.0
    %585 = vmatpush1.xpose.msra.mxu0 0.0
    %586 = vmatprep.subr.mxu0 0.0
    %587 = vmatpush1.xpose.msra.mxu0 0.0
    %588 = vmatprep.subr.mxu0 0.0
    %589 = vmatpush1.xpose.msra.mxu0 0.0
    %590 = vmatprep.subr.mxu0 0.0
    %591 = vmatpush1.xpose.msra.mxu0 0.0
    %592 = vmatprep.subr.mxu0 0.0
    %593 = vmatpush1.xpose.msra.mxu0 0.0
    %594 = vmatprep.subr.mxu0 0.0
    %595 = vmatpush1.xpose.msra.mxu0 0.0
    %596 = vmatprep.subr.mxu0 0.0
    %597 = vmatpush1.xpose.msra.mxu0 0.0
    %598 = vmatprep.subr.mxu0 0.0
    %599 = vmatpush1.xpose.msra.mxu0 0.0
    %600 = vmatprep.subr.mxu0 0.0
    %601 = vmatpush1.xpose.msra.mxu0 0.0
    %602 = vmatprep.subr.mxu0 0.0
    %603 = vmatpush1.xpose.msra.mxu0 0.0
    %604 = vmatprep.subr.mxu0 0.0
    %605 = vmatpush1.xpose.msra.mxu0 0.0
    %606 = vmatprep.subr.mxu0 0.0
    %607 = vmatpush1.xpose.msra.mxu0 0.0
    %608 = vmatprep.subr.mxu0 0.0
    %609 = vmatpush1.xpose.msra.mxu0 0.0
    %610 = vmatprep.subr.mxu0 0.0
    %611 = vmatpush1.xpose.msra.mxu0 0.0
    %612 = vmatprep.subr.mxu0 0.0
    %613 = vmatpush1.xpose.msra.mxu0 0.0
    %614 = vmatprep.subr.mxu0 0.0
    %615 = vmatpush1.xpose.msra.mxu0 0.0
    %616 = vmatprep.subr.mxu0 0.0
    %617 = vmatpush1.xpose.msra.mxu0 0.0
    %618 = vmatprep.subr.mxu0 0.0
    %619 = vmatpush1.xpose.msra.mxu0 0.0
    %620 = vmatprep.subr.mxu0 0.0
    %621 = vmatpush1.xpose.msra.mxu0 0.0
    %622 = vmatprep.subr.mxu0 0.0
    %623 = vmatpush1.xpose.msra.mxu0 0.0
    %624 = vmatprep.subr.mxu0 0.0
    %625 = vmatpush1.xpose.msra.mxu0 0.0
    %626 = vmatprep.subr.mxu0 0.0
    %627 = vmatpush1.xpose.msra.mxu0 0.0
    %628 = vmatprep.subr.mxu0 0.0
    %629 = vmatpush1.xpose.msra.mxu0 0.0
    %630 = vmatprep.mubr.f32.mxu0 %v167
    %631 = vmatmul.mubr.f32.gmra.mrb[0].mxu0 %v159
    %v632 = vpop.f32.mrb[0].mxu0
    %v633 = vadd.f32 %v563, %v632
    %v634 = vpop.f32.mrb[0].mxu0
    %635 = vdwg.mxu0
    %636 = vmatprep.subr.mxu0 %v57
    %637 = vmatpush1.xpose.msra.mxu0 %v56
    %638 = vmatprep.subr.mxu0 %v89
    %639 = vmatpush1.xpose.msra.mxu0 %v88
    %640 = vmatprep.subr.mxu0 0.0
    %641 = vmatpush1.xpose.msra.mxu0 0.0
    %642 = vmatprep.subr.mxu0 0.0
    %643 = vmatpush1.xpose.msra.mxu0 0.0
    %644 = vmatprep.subr.mxu0 0.0
    %645 = vmatpush1.xpose.msra.mxu0 0.0
    %646 = vmatprep.subr.mxu0 0.0
    %647 = vmatpush1.xpose.msra.mxu0 0.0
    %648 = vmatprep.subr.mxu0 0.0
    %649 = vmatpush1.xpose.msra.mxu0 0.0
    %650 = vmatprep.subr.mxu0 0.0
    %651 = vmatpush1.xpose.msra.mxu0 0.0
    %652 = vmatprep.subr.mxu0 0.0
    %653 = vmatpush1.xpose.msra.mxu0 0.0
    %654 = vmatprep.subr.mxu0 0.0
    %655 = vmatpush1.xpose.msra.mxu0 0.0
    %656 = vmatprep.subr.mxu0 0.0
    %657 = vmatpush1.xpose.msra.mxu0 0.0
    %658 = vmatprep.subr.mxu0 0.0
    %659 = vmatpush1.xpose.msra.mxu0 0.0
    %660 = vmatprep.subr.mxu0 0.0
    %661 = vmatpush1.xpose.msra.mxu0 0.0
    %662 = vmatprep.subr.mxu0 0.0
    %663 = vmatpush1.xpose.msra.mxu0 0.0
    %664 = vmatprep.subr.mxu0 0.0
    %665 = vmatpush1.xpose.msra.mxu0 0.0
    %666 = vmatprep.subr.mxu0 0.0
    %667 = vmatpush1.xpose.msra.mxu0 0.0
    %668 = vmatprep.subr.mxu0 0.0
    %669 = vmatpush1.xpose.msra.mxu0 0.0
    %670 = vmatprep.subr.mxu0 0.0
    %671 = vmatpush1.xpose.msra.mxu0 0.0
    %672 = vmatprep.subr.mxu0 0.0
    %673 = vmatpush1.xpose.msra.mxu0 0.0
    %674 = vmatprep.subr.mxu0 0.0
    %675 = vmatpush1.xpose.msra.mxu0 0.0
    %676 = vmatprep.subr.mxu0 0.0
    %677 = vmatpush1.xpose.msra.mxu0 0.0
    %678 = vmatprep.subr.mxu0 0.0
    %679 = vmatpush1.xpose.msra.mxu0 0.0
    %680 = vmatprep.subr.mxu0 0.0
    %681 = vmatpush1.xpose.msra.mxu0 0.0
    %682 = vmatprep.subr.mxu0 0.0
    %683 = vmatpush1.xpose.msra.mxu0 0.0
    %684 = vmatprep.subr.mxu0 0.0
    %685 = vmatpush1.xpose.msra.mxu0 0.0
    %686 = vmatprep.subr.mxu0 0.0
    %687 = vmatpush1.xpose.msra.mxu0 0.0
    %688 = vmatprep.subr.mxu0 0.0
    %689 = vmatpush1.xpose.msra.mxu0 0.0
    %690 = vmatprep.subr.mxu0 0.0
    %691 = vmatpush1.xpose.msra.mxu0 0.0
    %692 = vmatprep.subr.mxu0 0.0
    %693 = vmatpush1.xpose.msra.mxu0 0.0
    %694 = vmatprep.subr.mxu0 0.0
    %695 = vmatpush1.xpose.msra.mxu0 0.0
    %696 = vmatprep.subr.mxu0 0.0
    %697 = vmatpush1.xpose.msra.mxu0 0.0
    %698 = vmatprep.subr.mxu0 0.0
    %699 = vmatpush1.xpose.msra.mxu0 0.0
    %700 = vmatprep.mubr.f32.mxu0 %v168
    %701 = vmatmul.mubr.f32.gmra.mrb[0].mxu0 %v166
    %v702 = vpop.f32.mrb[0].mxu0
    %v703 = vadd.f32 %v633, %v702
    %v704 = vpop.f32.mrb[0].mxu0
    %705 = vdwg.mxu0
    %706 = vmatprep.subr.mxu0 %v59
    %707 = vmatpush1.xpose.msra.mxu0 %v58
    %708 = vmatprep.subr.mxu0 %v91
    %709 = vmatpush1.xpose.msra.mxu0 %v90
    %710 = vmatprep.subr.mxu0 0.0
    %711 = vmatpush1.xpose.msra.mxu0 0.0
    %712 = vmatprep.subr.mxu0 0.0
    %713 = vmatpush1.xpose.msra.mxu0 0.0
    %714 = vmatprep.subr.mxu0 0.0
    %715 = vmatpush1.xpose.msra.mxu0 0.0
    %716 = vmatprep.subr.mxu0 0.0
    %717 = vmatpush1.xpose.msra.mxu0 0.0
    %718 = vmatprep.subr.mxu0 0.0
    %719 = vmatpush1.xpose.msra.mxu0 0.0
    %720 = vmatprep.subr.mxu0 0.0
    %721 = vmatpush1.xpose.msra.mxu0 0.0
    %722 = vmatprep.subr.mxu0 0.0
    %723 = vmatpush1.xpose.msra.mxu0 0.0
    %724 = vmatprep.subr.mxu0 0.0
    %725 = vmatpush1.xpose.msra.mxu0 0.0
    %726 = vmatprep.subr.mxu0 0.0
    %727 = vmatpush1.xpose.msra.mxu0 0.0
    %728 = vmatprep.subr.mxu0 0.0
    %729 = vmatpush1.xpose.msra.mxu0 0.0
    %730 = vmatprep.subr.mxu0 0.0
    %731 = vmatpush1.xpose.msra.mxu0 0.0
    %732 = vmatprep.subr.mxu0 0.0
    %733 = vmatpush1.xpose.msra.mxu0 0.0
    %734 = vmatprep.subr.mxu0 0.0
    %735 = vmatpush1.xpose.msra.mxu0 0.0
    %736 = vmatprep.subr.mxu0 0.0
    %737 = vmatpush1.xpose.msra.mxu0 0.0
    %738 = vmatprep.subr.mxu0 0.0
    %739 = vmatpush1.xpose.msra.mxu0 0.0
    %740 = vmatprep.subr.mxu0 0.0
    %741 = vmatpush1.xpose.msra.mxu0 0.0
    %742 = vmatprep.subr.mxu0 0.0
    %743 = vmatpush1.xpose.msra.mxu0 0.0
    %744 = vmatprep.subr.mxu0 0.0
    %745 = vmatpush1.xpose.msra.mxu0 0.0
    %746 = vmatprep.subr.mxu0 0.0
    %747 = vmatpush1.xpose.msra.mxu0 0.0
    %748 = vmatprep.subr.mxu0 0.0
    %749 = vmatpush1.xpose.msra.mxu0 0.0
    %750 = vmatprep.subr.mxu0 0.0
    %751 = vmatpush1.xpose.msra.mxu0 0.0
    %752 = vmatprep.subr.mxu0 0.0
    %753 = vmatpush1.xpose.msra.mxu0 0.0
    %754 = vmatprep.subr.mxu0 0.0
    %755 = vmatpush1.xpose.msra.mxu0 0.0
    %756 = vmatprep.subr.mxu0 0.0
    %757 = vmatpush1.xpose.msra.mxu0 0.0
    %758 = vmatprep.subr.mxu0 0.0
    %759 = vmatpush1.xpose.msra.mxu0 0.0
    %760 = vmatprep.subr.mxu0 0.0
    %761 = vmatpush1.xpose.msra.mxu0 0.0
    %762 = vmatprep.subr.mxu0 0.0
    %763 = vmatpush1.xpose.msra.mxu0 0.0
    %764 = vmatprep.subr.mxu0 0.0
    %765 = vmatpush1.xpose.msra.mxu0 0.0
    %766 = vmatprep.subr.mxu0 0.0
    %767 = vmatpush1.xpose.msra.mxu0 0.0
    %768 = vmatprep.subr.mxu0 0.0
    %769 = vmatpush1.xpose.msra.mxu0 0.0
    %770 = vmatprep.mubr.f32.mxu0 %v184
    %771 = vmatmul.mubr.f32.gmra.mrb[0].mxu0 %v176
    %v772 = vpop.f32.mrb[0].mxu0
    %v773 = vadd.f32 %v703, %v772
    %v774 = vpop.f32.mrb[0].mxu0
    %775 = vdwg.mxu0
    %776 = vmatprep.subr.mxu0 %v61
    %777 = vmatpush1.xpose.msra.mxu0 %v60
    %778 = vmatprep.subr.mxu0 %v93
    %779 = vmatpush1.xpose.msra.mxu0 %v92
    %780 = vmatprep.subr.mxu0 0.0
    %781 = vmatpush1.xpose.msra.mxu0 0.0
    %782 = vmatprep.subr.mxu0 0.0
    %783 = vmatpush1.xpose.msra.mxu0 0.0
    %784 = vmatprep.subr.mxu0 0.0
    %785 = vmatpush1.xpose.msra.mxu0 0.0
    %786 = vmatprep.subr.mxu0 0.0
    %787 = vmatpush1.xpose.msra.mxu0 0.0
    %788 = vmatprep.subr.mxu0 0.0
    %789 = vmatpush1.xpose.msra.mxu0 0.0
    %790 = vmatprep.subr.mxu0 0.0
    %791 = vmatpush1.xpose.msra.mxu0 0.0
    %792 = vmatprep.subr.mxu0 0.0
    %793 = vmatpush1.xpose.msra.mxu0 0.0
    %794 = vmatprep.subr.mxu0 0.0
    %795 = vmatpush1.xpose.msra.mxu0 0.0
    %796 = vmatprep.subr.mxu0 0.0
    %797 = vmatpush1.xpose.msra.mxu0 0.0
    %798 = vmatprep.subr.mxu0 0.0
    %799 = vmatpush1.xpose.msra.mxu0 0.0
    %800 = vmatprep.subr.mxu0 0.0
    %801 = vmatpush1.xpose.msra.mxu0 0.0
    %802 = vmatprep.subr.mxu0 0.0
    %803 = vmatpush1.xpose.msra.mxu0 0.0
    %804 = vmatprep.subr.mxu0 0.0
    %805 = vmatpush1.xpose.msra.mxu0 0.0
    %806 = vmatprep.subr.mxu0 0.0
    %807 = vmatpush1.xpose.msra.mxu0 0.0
    %808 = vmatprep.subr.mxu0 0.0
    %809 = vmatpush1.xpose.msra.mxu0 0.0
    %810 = vmatprep.subr.mxu0 0.0
    %811 = vmatpush1.xpose.msra.mxu0 0.0
    %812 = vmatprep.subr.mxu0 0.0
    %813 = vmatpush1.xpose.msra.mxu0 0.0
    %814 = vmatprep.subr.mxu0 0.0
    %815 = vmatpush1.xpose.msra.mxu0 0.0
    %816 = vmatprep.subr.mxu0 0.0
    %817 = vmatpush1.xpose.msra.mxu0 0.0
    %818 = vmatprep.subr.mxu0 0.0
    %819 = vmatpush1.xpose.msra.mxu0 0.0
    %820 = vmatprep.subr.mxu0 0.0
    %821 = vmatpush1.xpose.msra.mxu0 0.0
    %822 = vmatprep.subr.mxu0 0.0
    %823 = vmatpush1.xpose.msra.mxu0 0.0
    %824 = vmatprep.subr.mxu0 0.0
    %825 = vmatpush1.xpose.msra.mxu0 0.0
    %826 = vmatprep.subr.mxu0 0.0
    %827 = vmatpush1.xpose.msra.mxu0 0.0
    %828 = vmatprep.subr.mxu0 0.0
    %829 = vmatpush1.xpose.msra.mxu0 0.0
    %830 = vmatprep.subr.mxu0 0.0
    %831 = vmatpush1.xpose.msra.mxu0 0.0
    %832 = vmatprep.subr.mxu0 0.0
    %833 = vmatpush1.xpose.msra.mxu0 0.0
    %834 = vmatprep.subr.mxu0 0.0
    %835 = vmatpush1.xpose.msra.mxu0 0.0
    %836 = vmatprep.subr.mxu0 0.0
    %837 = vmatpush1.xpose.msra.mxu0 0.0
    %838 = vmatprep.subr.mxu0 0.0
    %839 = vmatpush1.xpose.msra.mxu0 0.0
    %840 = vmatprep.mubr.f32.mxu0 %v185
    %841 = vmatmul.mubr.f32.gmra.mrb[0].mxu0 %v183
    %v842 = vpop.f32.mrb[0].mxu0
    %v843 = vadd.f32 %v773, %v842
    %v844 = vpop.f32.mrb[0].mxu0
    %845 = vdwg.mxu0
    %846 = vmatprep.subr.mxu0 %v63
    %847 = vmatpush1.xpose.msra.mxu0 %v62
    %848 = vmatprep.subr.mxu0 %v95
    %849 = vmatpush1.xpose.msra.mxu0 %v94
    %850 = vmatprep.subr.mxu0 0.0
    %851 = vmatpush1.xpose.msra.mxu0 0.0
    %852 = vmatprep.subr.mxu0 0.0
    %853 = vmatpush1.xpose.msra.mxu0 0.0
    %854 = vmatprep.subr.mxu0 0.0
    %855 = vmatpush1.xpose.msra.mxu0 0.0
    %856 = vmatprep.subr.mxu0 0.0
    %857 = vmatpush1.xpose.msra.mxu0 0.0
    %858 = vmatprep.subr.mxu0 0.0
    %859 = vmatpush1.xpose.msra.mxu0 0.0
    %860 = vmatprep.subr.mxu0 0.0
    %861 = vmatpush1.xpose.msra.mxu0 0.0
    %862 = vmatprep.subr.mxu0 0.0
    %863 = vmatpush1.xpose.msra.mxu0 0.0
    %864 = vmatprep.subr.mxu0 0.0
    %865 = vmatpush1.xpose.msra.mxu0 0.0
    %866 = vmatprep.subr.mxu0 0.0
    %867 = vmatpush1.xpose.msra.mxu0 0.0
    %868 = vmatprep.subr.mxu0 0.0
    %869 = vmatpush1.xpose.msra.mxu0 0.0
    %870 = vmatprep.subr.mxu0 0.0
    %871 = vmatpush1.xpose.msra.mxu0 0.0
    %872 = vmatprep.subr.mxu0 0.0
    %873 = vmatpush1.xpose.msra.mxu0 0.0
    %874 = vmatprep.subr.mxu0 0.0
    %875 = vmatpush1.xpose.msra.mxu0 0.0
    %876 = vmatprep.subr.mxu0 0.0
    %877 = vmatpush1.xpose.msra.mxu0 0.0
    %878 = vmatprep.subr.mxu0 0.0
    %879 = vmatpush1.xpose.msra.mxu0 0.0
    %880 = vmatprep.subr.mxu0 0.0
    %881 = vmatpush1.xpose.msra.mxu0 0.0
    %882 = vmatprep.subr.mxu0 0.0
    %883 = vmatpush1.xpose.msra.mxu0 0.0
    %884 = vmatprep.subr.mxu0 0.0
    %885 = vmatpush1.xpose.msra.mxu0 0.0
    %886 = vmatprep.subr.mxu0 0.0
    %887 = vmatpush1.xpose.msra.mxu0 0.0
    %888 = vmatprep.subr.mxu0 0.0
    %889 = vmatpush1.xpose.msra.mxu0 0.0
    %890 = vmatprep.subr.mxu0 0.0
    %891 = vmatpush1.xpose.msra.mxu0 0.0
    %892 = vmatprep.subr.mxu0 0.0
    %893 = vmatpush1.xpose.msra.mxu0 0.0
    %894 = vmatprep.subr.mxu0 0.0
    %895 = vmatpush1.xpose.msra.mxu0 0.0
    %896 = vmatprep.subr.mxu0 0.0
    %897 = vmatpush1.xpose.msra.mxu0 0.0
    %898 = vmatprep.subr.mxu0 0.0
    %899 = vmatpush1.xpose.msra.mxu0 0.0
    %900 = vmatprep.subr.mxu0 0.0
    %901 = vmatpush1.xpose.msra.mxu0 0.0
    %902 = vmatprep.subr.mxu0 0.0
    %903 = vmatpush1.xpose.msra.mxu0 0.0
    %904 = vmatprep.subr.mxu0 0.0
    %905 = vmatpush1.xpose.msra.mxu0 0.0
    %906 = vmatprep.subr.mxu0 0.0
    %907 = vmatpush1.xpose.msra.mxu0 0.0
    %908 = vmatprep.subr.mxu0 0.0
    %909 = vmatpush1.xpose.msra.mxu0 0.0
    %910 = vmatprep.mubr.f32.mxu0 %v201
    %911 = vmatmul.mubr.f32.gmra.mrb[0].mxu0 %v193
    %v912 = vpop.f32.mrb[0].mxu0
    %v913 = vadd.f32 %v843, %v912
    %v914 = vpop.f32.mrb[0].mxu0
    %915 = vdwg.mxu0
    %916 = vmatprep.subr.mxu0 %v65
    %917 = vmatpush1.xpose.msra.mxu0 %v64
    %918 = vmatprep.subr.mxu0 %v97
    %919 = vmatpush1.xpose.msra.mxu0 %v96
    %920 = vmatprep.subr.mxu0 0.0
    %921 = vmatpush1.xpose.msra.mxu0 0.0
    %922 = vmatprep.subr.mxu0 0.0
    %923 = vmatpush1.xpose.msra.mxu0 0.0
    %924 = vmatprep.subr.mxu0 0.0
    %925 = vmatpush1.xpose.msra.mxu0 0.0
    %926 = vmatprep.subr.mxu0 0.0
    %927 = vmatpush1.xpose.msra.mxu0 0.0
    %928 = vmatprep.subr.mxu0 0.0
    %929 = vmatpush1.xpose.msra.mxu0 0.0
    %930 = vmatprep.subr.mxu0 0.0
    %931 = vmatpush1.xpose.msra.mxu0 0.0
    %932 = vmatprep.subr.mxu0 0.0
    %933 = vmatpush1.xpose.msra.mxu0 0.0
    %934 = vmatprep.subr.mxu0 0.0
    %935 = vmatpush1.xpose.msra.mxu0 0.0
    %936 = vmatprep.subr.mxu0 0.0
    %937 = vmatpush1.xpose.msra.mxu0 0.0
    %938 = vmatprep.subr.mxu0 0.0
    %939 = vmatpush1.xpose.msra.mxu0 0.0
    %940 = vmatprep.subr.mxu0 0.0
    %941 = vmatpush1.xpose.msra.mxu0 0.0
    %942 = vmatprep.subr.mxu0 0.0
    %943 = vmatpush1.xpose.msra.mxu0 0.0
    %944 = vmatprep.subr.mxu0 0.0
    %945 = vmatpush1.xpose.msra.mxu0 0.0
    %946 = vmatprep.subr.mxu0 0.0
    %947 = vmatpush1.xpose.msra.mxu0 0.0
    %948 = vmatprep.subr.mxu0 0.0
    %949 = vmatpush1.xpose.msra.mxu0 0.0
    %950 = vmatprep.subr.mxu0 0.0
    %951 = vmatpush1.xpose.msra.mxu0 0.0
    %952 = vmatprep.subr.mxu0 0.0
    %953 = vmatpush1.xpose.msra.mxu0 0.0
    %954 = vmatprep.subr.mxu0 0.0
    %955 = vmatpush1.xpose.msra.mxu0 0.0
    %956 = vmatprep.subr.mxu0 0.0
    %957 = vmatpush1.xpose.msra.mxu0 0.0
    %958 = vmatprep.subr.mxu0 0.0
    %959 = vmatpush1.xpose.msra.mxu0 0.0
    %960 = vmatprep.subr.mxu0 0.0
    %961 = vmatpush1.xpose.msra.mxu0 0.0
    %962 = vmatprep.subr.mxu0 0.0
    %963 = vmatpush1.xpose.msra.mxu0 0.0
    %964 = vmatprep.subr.mxu0 0.0
    %965 = vmatpush1.xpose.msra.mxu0 0.0
    %966 = vmatprep.subr.mxu0 0.0
    %967 = vmatpush1.xpose.msra.mxu0 0.0
    %968 = vmatprep.subr.mxu0 0.0
    %969 = vmatpush1.xpose.msra.mxu0 0.0
    %970 = vmatprep.subr.mxu0 0.0
    %971 = vmatpush1.xpose.msra.mxu0 0.0
    %972 = vmatprep.subr.mxu0 0.0
    %973 = vmatpush1.xpose.msra.mxu0 0.0
    %974 = vmatprep.subr.mxu0 0.0
    %975 = vmatpush1.xpose.msra.mxu0 0.0
    %976 = vmatprep.subr.mxu0 0.0
    %977 = vmatpush1.xpose.msra.mxu0 0.0
    %978 = vmatprep.subr.mxu0 0.0
    %979 = vmatpush1.xpose.msra.mxu0 0.0
    %980 = vmatprep.mubr.f32.mxu0 %v202
    %981 = vmatmul.mubr.f32.gmra.mrb[0].mxu0 %v200
    %v982 = vpop.f32.mrb[0].mxu0
    %v983 = vadd.f32 %v913, %v982
    %v984 = vpop.f32.mrb[0].mxu0
    %985 = vdwg.mxu0
    %986 = vmatprep.subr.mxu0 %v67
    %987 = vmatpush1.xpose.msra.mxu0 %v66
    %988 = vmatprep.subr.mxu0 %v99
    %989 = vmatpush1.xpose.msra.mxu0 %v98
    %990 = vmatprep.subr.mxu0 0.0
    %991 = vmatpush1.xpose.msra.mxu0 0.0
    %992 = vmatprep.subr.mxu0 0.0
    %993 = vmatpush1.xpose.msra.mxu0 0.0
    %994 = vmatprep.subr.mxu0 0.0
    %995 = vmatpush1.xpose.msra.mxu0 0.0
    %996 = vmatprep.subr.mxu0 0.0
    %997 = vmatpush1.xpose.msra.mxu0 0.0
    %998 = vmatprep.subr.mxu0 0.0
    %999 = vmatpush1.xpose.msra.mxu0 0.0
    %1000 = vmatprep.subr.mxu0 0.0
    %1001 = vmatpush1.xpose.msra.mxu0 0.0
    %1002 = vmatprep.subr.mxu0 0.0
    %1003 = vmatpush1.xpose.msra.mxu0 0.0
    %1004 = vmatprep.subr.mxu0 0.0
    %1005 = vmatpush1.xpose.msra.mxu0 0.0
    %1006 = vmatprep.subr.mxu0 0.0
    %1007 = vmatpush1.xpose.msra.mxu0 0.0
    %1008 = vmatprep.subr.mxu0 0.0
    %1009 = vmatpush1.xpose.msra.mxu0 0.0
    %1010 = vmatprep.subr.mxu0 0.0
    %1011 = vmatpush1.xpose.msra.mxu0 0.0
    %1012 = vmatprep.subr.mxu0 0.0
    %1013 = vmatpush1.xpose.msra.mxu0 0.0
    %1014 = vmatprep.subr.mxu0 0.0
    %1015 = vmatpush1.xpose.msra.mxu0 0.0
    %1016 = vmatprep.subr.mxu0 0.0
    %1017 = vmatpush1.xpose.msra.mxu0 0.0
    %1018 = vmatprep.subr.mxu0 0.0
    %1019 = vmatpush1.xpose.msra.mxu0 0.0
    %1020 = vmatprep.subr.mxu0 0.0
    %1021 = vmatpush1.xpose.msra.mxu0 0.0
    %1022 = vmatprep.subr.mxu0 0.0
    %1023 = vmatpush1.xpose.msra.mxu0 0.0
    %1024 = vmatprep.subr.mxu0 0.0
    %1025 = vmatpush1.xpose.msra.mxu0 0.0
    %1026 = vmatprep.subr.mxu0 0.0
    %1027 = vmatpush1.xpose.msra.mxu0 0.0
    %1028 = vmatprep.subr.mxu0 0.0
    %1029 = vmatpush1.xpose.msra.mxu0 0.0
    %1030 = vmatprep.subr.mxu0 0.0
    %1031 = vmatpush1.xpose.msra.mxu0 0.0
    %1032 = vmatprep.subr.mxu0 0.0
    %1033 = vmatpush1.xpose.msra.mxu0 0.0
    %1034 = vmatprep.subr.mxu0 0.0
    %1035 = vmatpush1.xpose.msra.mxu0 0.0
    %1036 = vmatprep.subr.mxu0 0.0
    %1037 = vmatpush1.xpose.msra.mxu0 0.0
    %1038 = vmatprep.subr.mxu0 0.0
    %1039 = vmatpush1.xpose.msra.mxu0 0.0
    %1040 = vmatprep.subr.mxu0 0.0
    %1041 = vmatpush1.xpose.msra.mxu0 0.0
    %1042 = vmatprep.subr.mxu0 0.0
    %1043 = vmatpush1.xpose.msra.mxu0 0.0
    %1044 = vmatprep.subr.mxu0 0.0
    %1045 = vmatpush1.xpose.msra.mxu0 0.0
    %1046 = vmatprep.subr.mxu0 0.0
    %1047 = vmatpush1.xpose.msra.mxu0 0.0
    %1048 = vmatprep.subr.mxu0 0.0
    %1049 = vmatpush1.xpose.msra.mxu0 0.0
    %1050 = vmatprep.mubr.f32.mxu0 %v218
    %1051 = vmatmul.mubr.f32.gmra.mrb[0].mxu0 %v210
    %v1052 = vpop.f32.mrb[0].mxu0
    %v1053 = vadd.f32 %v983, %v1052
    %v1054 = vpop.f32.mrb[0].mxu0
    %1055 = vdwg.mxu0
    %1056 = vmatprep.subr.mxu0 %v69
    %1057 = vmatpush1.xpose.msra.mxu0 %v68
    %1058 = vmatprep.subr.mxu0 %v101
    %1059 = vmatpush1.xpose.msra.mxu0 %v100
    %1060 = vmatprep.subr.mxu0 0.0
    %1061 = vmatpush1.xpose.msra.mxu0 0.0
    %1062 = vmatprep.subr.mxu0 0.0
    %1063 = vmatpush1.xpose.msra.mxu0 0.0
    %1064 = vmatprep.subr.mxu0 0.0
    %1065 = vmatpush1.xpose.msra.mxu0 0.0
    %1066 = vmatprep.subr.mxu0 0.0
    %1067 = vmatpush1.xpose.msra.mxu0 0.0
    %1068 = vmatprep.subr.mxu0 0.0
    %1069 = vmatpush1.xpose.msra.mxu0 0.0
    %1070 = vmatprep.subr.mxu0 0.0
    %1071 = vmatpush1.xpose.msra.mxu0 0.0
    %1072 = vmatprep.subr.mxu0 0.0
    %1073 = vmatpush1.xpose.msra.mxu0 0.0
    %1074 = vmatprep.subr.mxu0 0.0
    %1075 = vmatpush1.xpose.msra.mxu0 0.0
    %1076 = vmatprep.subr.mxu0 0.0
    %1077 = vmatpush1.xpose.msra.mxu0 0.0
    %1078 = vmatprep.subr.mxu0 0.0
    %1079 = vmatpush1.xpose.msra.mxu0 0.0
    %1080 = vmatprep.subr.mxu0 0.0
    %1081 = vmatpush1.xpose.msra.mxu0 0.0
    %1082 = vmatprep.subr.mxu0 0.0
    %1083 = vmatpush1.xpose.msra.mxu0 0.0
    %1084 = vmatprep.subr.mxu0 0.0
    %1085 = vmatpush1.xpose.msra.mxu0 0.0
    %1086 = vmatprep.subr.mxu0 0.0
    %1087 = vmatpush1.xpose.msra.mxu0 0.0
    %1088 = vmatprep.subr.mxu0 0.0
    %1089 = vmatpush1.xpose.msra.mxu0 0.0
    %1090 = vmatprep.subr.mxu0 0.0
    %1091 = vmatpush1.xpose.msra.mxu0 0.0
    %1092 = vmatprep.subr.mxu0 0.0
    %1093 = vmatpush1.xpose.msra.mxu0 0.0
    %1094 = vmatprep.subr.mxu0 0.0
    %1095 = vmatpush1.xpose.msra.mxu0 0.0
    %1096 = vmatprep.subr.mxu0 0.0
    %1097 = vmatpush1.xpose.msra.mxu0 0.0
    %1098 = vmatprep.subr.mxu0 0.0
    %1099 = vmatpush1.xpose.msra.mxu0 0.0
    %1100 = vmatprep.subr.mxu0 0.0
    %1101 = vmatpush1.xpose.msra.mxu0 0.0
    %1102 = vmatprep.subr.mxu0 0.0
    %1103 = vmatpush1.xpose.msra.mxu0 0.0
    %1104 = vmatprep.subr.mxu0 0.0
    %1105 = vmatpush1.xpose.msra.mxu0 0.0
    %1106 = vmatprep.subr.mxu0 0.0
    %1107 = vmatpush1.xpose.msra.mxu0 0.0
    %1108 = vmatprep.subr.mxu0 0.0
    %1109 = vmatpush1.xpose.msra.mxu0 0.0
    %1110 = vmatprep.subr.mxu0 0.0
    %1111 = vmatpush1.xpose.msra.mxu0 0.0
    %1112 = vmatprep.subr.mxu0 0.0
    %1113 = vmatpush1.xpose.msra.mxu0 0.0
    %1114 = vmatprep.subr.mxu0 0.0
    %1115 = vmatpush1.xpose.msra.mxu0 0.0
    %1116 = vmatprep.subr.mxu0 0.0
    %1117 = vmatpush1.xpose.msra.mxu0 0.0
    %1118 = vmatprep.subr.mxu0 0.0
    %1119 = vmatpush1.xpose.msra.mxu0 0.0
    %1120 = vmatprep.mubr.f32.mxu0 %v219
    %1121 = vmatmul.mubr.f32.gmra.mrb[0].mxu0 %v217
    %v1122 = vpop.f32.mrb[0].mxu0
    %v1123 = vadd.f32 %v1053, %v1122
    %v1124 = vpop.f32.mrb[0].mxu0
    %1125 = vdwg.mxu0
    %1126 = vmatprep.subr.mxu0 %v71
    %1127 = vmatpush1.xpose.msra.mxu0 %v70
    %1128 = vmatprep.subr.mxu0 %v103
    %1129 = vmatpush1.xpose.msra.mxu0 %v102
    %1130 = vmatprep.subr.mxu0 0.0
    %1131 = vmatpush1.xpose.msra.mxu0 0.0
    %1132 = vmatprep.subr.mxu0 0.0
    %1133 = vmatpush1.xpose.msra.mxu0 0.0
    %1134 = vmatprep.subr.mxu0 0.0
    %1135 = vmatpush1.xpose.msra.mxu0 0.0
    %1136 = vmatprep.subr.mxu0 0.0
    %1137 = vmatpush1.xpose.msra.mxu0 0.0
    %1138 = vmatprep.subr.mxu0 0.0
    %1139 = vmatpush1.xpose.msra.mxu0 0.0
    %1140 = vmatprep.subr.mxu0 0.0
    %1141 = vmatpush1.xpose.msra.mxu0 0.0
    %1142 = vmatprep.subr.mxu0 0.0
    %1143 = vmatpush1.xpose.msra.mxu0 0.0
    %1144 = vmatprep.subr.mxu0 0.0
    %1145 = vmatpush1.xpose.msra.mxu0 0.0
    %1146 = vmatprep.subr.mxu0 0.0
    %1147 = vmatpush1.xpose.msra.mxu0 0.0
    %1148 = vmatprep.subr.mxu0 0.0
    %1149 = vmatpush1.xpose.msra.mxu0 0.0
    %1150 = vmatprep.subr.mxu0 0.0
    %1151 = vmatpush1.xpose.msra.mxu0 0.0
    %1152 = vmatprep.subr.mxu0 0.0
    %1153 = vmatpush1.xpose.msra.mxu0 0.0
    %1154 = vmatprep.subr.mxu0 0.0
    %1155 = vmatpush1.xpose.msra.mxu0 0.0
    %1156 = vmatprep.subr.mxu0 0.0
    %1157 = vmatpush1.xpose.msra.mxu0 0.0
    %1158 = vmatprep.subr.mxu0 0.0
    %1159 = vmatpush1.xpose.msra.mxu0 0.0
    %1160 = vmatprep.subr.mxu0 0.0
    %1161 = vmatpush1.xpose.msra.mxu0 0.0
    %1162 = vmatprep.subr.mxu0 0.0
    %1163 = vmatpush1.xpose.msra.mxu0 0.0
    %1164 = vmatprep.subr.mxu0 0.0
    %1165 = vmatpush1.xpose.msra.mxu0 0.0
    %1166 = vmatprep.subr.mxu0 0.0
    %1167 = vmatpush1.xpose.msra.mxu0 0.0
    %1168 = vmatprep.subr.mxu0 0.0
    %1169 = vmatpush1.xpose.msra.mxu0 0.0
    %1170 = vmatprep.subr.mxu0 0.0
    %1171 = vmatpush1.xpose.msra.mxu0 0.0
    %1172 = vmatprep.subr.mxu0 0.0
    %1173 = vmatpush1.xpose.msra.mxu0 0.0
    %1174 = vmatprep.subr.mxu0 0.0
    %1175 = vmatpush1.xpose.msra.mxu0 0.0
    %1176 = vmatprep.subr.mxu0 0.0
    %1177 = vmatpush1.xpose.msra.mxu0 0.0
    %1178 = vmatprep.subr.mxu0 0.0
    %1179 = vmatpush1.xpose.msra.mxu0 0.0
    %1180 = vmatprep.subr.mxu0 0.0
    %1181 = vmatpush1.xpose.msra.mxu0 0.0
    %1182 = vmatprep.subr.mxu0 0.0
    %1183 = vmatpush1.xpose.msra.mxu0 0.0
    %1184 = vmatprep.subr.mxu0 0.0
    %1185 = vmatpush1.xpose.msra.mxu0 0.0
    %1186 = vmatprep.subr.mxu0 0.0
    %1187 = vmatpush1.xpose.msra.mxu0 0.0
    %1188 = vmatprep.subr.mxu0 0.0
    %1189 = vmatpush1.xpose.msra.mxu0 0.0
    %1190 = vmatprep.mubr.f32.mxu0 %v235
    %1191 = vmatmul.mubr.f32.gmra.mrb[0].mxu0 %v227
    %v1192 = vpop.f32.mrb[0].mxu0
    %v1193 = vadd.f32 %v1123, %v1192
    %v1194 = vpop.f32.mrb[0].mxu0
    %1195 = vdwg.mxu0
    %1196 = vmatprep.subr.mxu0 %v73
    %1197 = vmatpush1.xpose.msra.mxu0 %v72
    %1198 = vmatprep.subr.mxu0 %v105
    %1199 = vmatpush1.xpose.msra.mxu0 %v104
    %1200 = vmatprep.subr.mxu0 0.0
    %1201 = vmatpush1.xpose.msra.mxu0 0.0
    %1202 = vmatprep.subr.mxu0 0.0
    %1203 = vmatpush1.xpose.msra.mxu0 0.0
    %1204 = vmatprep.subr.mxu0 0.0
    %1205 = vmatpush1.xpose.msra.mxu0 0.0
    %1206 = vmatprep.subr.mxu0 0.0
    %1207 = vmatpush1.xpose.msra.mxu0 0.0
    %1208 = vmatprep.subr.mxu0 0.0
    %1209 = vmatpush1.xpose.msra.mxu0 0.0
    %1210 = vmatprep.subr.mxu0 0.0
    %1211 = vmatpush1.xpose.msra.mxu0 0.0
    %1212 = vmatprep.subr.mxu0 0.0
    %1213 = vmatpush1.xpose.msra.mxu0 0.0
    %1214 = vmatprep.subr.mxu0 0.0
    %1215 = vmatpush1.xpose.msra.mxu0 0.0
    %1216 = vmatprep.subr.mxu0 0.0
    %1217 = vmatpush1.xpose.msra.mxu0 0.0
    %1218 = vmatprep.subr.mxu0 0.0
    %1219 = vmatpush1.xpose.msra.mxu0 0.0
    %1220 = vmatprep.subr.mxu0 0.0
    %1221 = vmatpush1.xpose.msra.mxu0 0.0
    %1222 = vmatprep.subr.mxu0 0.0
    %1223 = vmatpush1.xpose.msra.mxu0 0.0
    %1224 = vmatprep.subr.mxu0 0.0
    %1225 = vmatpush1.xpose.msra.mxu0 0.0
    %1226 = vmatprep.subr.mxu0 0.0
    %1227 = vmatpush1.xpose.msra.mxu0 0.0
    %1228 = vmatprep.subr.mxu0 0.0
    %1229 = vmatpush1.xpose.msra.mxu0 0.0
    %1230 = vmatprep.subr.mxu0 0.0
    %1231 = vmatpush1.xpose.msra.mxu0 0.0
    %1232 = vmatprep.subr.mxu0 0.0
    %1233 = vmatpush1.xpose.msra.mxu0 0.0
    %1234 = vmatprep.subr.mxu0 0.0
    %1235 = vmatpush1.xpose.msra.mxu0 0.0
    %1236 = vmatprep.subr.mxu0 0.0
    %1237 = vmatpush1.xpose.msra.mxu0 0.0
    %1238 = vmatprep.subr.mxu0 0.0
    %1239 = vmatpush1.xpose.msra.mxu0 0.0
    %1240 = vmatprep.subr.mxu0 0.0
    %1241 = vmatpush1.xpose.msra.mxu0 0.0
    %1242 = vmatprep.subr.mxu0 0.0
    %1243 = vmatpush1.xpose.msra.mxu0 0.0
    %1244 = vmatprep.subr.mxu0 0.0
    %1245 = vmatpush1.xpose.msra.mxu0 0.0
    %1246 = vmatprep.subr.mxu0 0.0
    %1247 = vmatpush1.xpose.msra.mxu0 0.0
    %1248 = vmatprep.subr.mxu0 0.0
    %1249 = vmatpush1.xpose.msra.mxu0 0.0
    %1250 = vmatprep.subr.mxu0 0.0
    %1251 = vmatpush1.xpose.msra.mxu0 0.0
    %1252 = vmatprep.subr.mxu0 0.0
    %1253 = vmatpush1.xpose.msra.mxu0 0.0
    %1254 = vmatprep.subr.mxu0 0.0
    %1255 = vmatpush1.xpose.msra.mxu0 0.0
    %1256 = vmatprep.subr.mxu0 0.0
    %1257 = vmatpush1.xpose.msra.mxu0 0.0
    %1258 = vmatprep.subr.mxu0 0.0
    %1259 = vmatpush1.xpose.msra.mxu0 0.0
    %1260 = vmatprep.mubr.f32.mxu0 %v236
    %1261 = vmatmul.mubr.f32.gmra.mrb[0].mxu0 %v234
    %v1262 = vpop.f32.mrb[0].mxu0
    %v1263 = vadd.f32 %v1193, %v1262
    %v1264 = vpop.f32.mrb[0].mxu0
    %1265 = vdwg.mxu0
    %1266 = vmatprep.subr.mxu0 %v75
    %1267 = vmatpush1.xpose.msra.mxu0 %v74
    %1268 = vmatprep.subr.mxu0 %v107
    %1269 = vmatpush1.xpose.msra.mxu0 %v106
    %1270 = vmatprep.subr.mxu0 0.0
    %1271 = vmatpush1.xpose.msra.mxu0 0.0
    %1272 = vmatprep.subr.mxu0 0.0
    %1273 = vmatpush1.xpose.msra.mxu0 0.0
    %1274 = vmatprep.subr.mxu0 0.0
    %1275 = vmatpush1.xpose.msra.mxu0 0.0
    %1276 = vmatprep.subr.mxu0 0.0
    %1277 = vmatpush1.xpose.msra.mxu0 0.0
    %1278 = vmatprep.subr.mxu0 0.0
    %1279 = vmatpush1.xpose.msra.mxu0 0.0
    %1280 = vmatprep.subr.mxu0 0.0
    %1281 = vmatpush1.xpose.msra.mxu0 0.0
    %1282 = vmatprep.subr.mxu0 0.0
    %1283 = vmatpush1.xpose.msra.mxu0 0.0
    %1284 = vmatprep.subr.mxu0 0.0
    %1285 = vmatpush1.xpose.msra.mxu0 0.0
    %1286 = vmatprep.subr.mxu0 0.0
    %1287 = vmatpush1.xpose.msra.mxu0 0.0
    %1288 = vmatprep.subr.mxu0 0.0
    %1289 = vmatpush1.xpose.msra.mxu0 0.0
    %1290 = vmatprep.subr.mxu0 0.0
    %1291 = vmatpush1.xpose.msra.mxu0 0.0
    %1292 = vmatprep.subr.mxu0 0.0
    %1293 = vmatpush1.xpose.msra.mxu0 0.0
    %1294 = vmatprep.subr.mxu0 0.0
    %1295 = vmatpush1.xpose.msra.mxu0 0.0
    %1296 = vmatprep.subr.mxu0 0.0
    %1297 = vmatpush1.xpose.msra.mxu0 0.0
    %1298 = vmatprep.subr.mxu0 0.0
    %1299 = vmatpush1.xpose.msra.mxu0 0.0
    %1300 = vmatprep.subr.mxu0 0.0
    %1301 = vmatpush1.xpose.msra.mxu0 0.0
    %1302 = vmatprep.subr.mxu0 0.0
    %1303 = vmatpush1.xpose.msra.mxu0 0.0
    %1304 = vmatprep.subr.mxu0 0.0
    %1305 = vmatpush1.xpose.msra.mxu0 0.0
    %1306 = vmatprep.subr.mxu0 0.0
    %1307 = vmatpush1.xpose.msra.mxu0 0.0
    %1308 = vmatprep.subr.mxu0 0.0
    %1309 = vmatpush1.xpose.msra.mxu0 0.0
    %1310 = vmatprep.subr.mxu0 0.0
    %1311 = vmatpush1.xpose.msra.mxu0 0.0
    %1312 = vmatprep.subr.mxu0 0.0
    %1313 = vmatpush1.xpose.msra.mxu0 0.0
    %1314 = vmatprep.subr.mxu0 0.0
    %1315 = vmatpush1.xpose.msra.mxu0 0.0
    %1316 = vmatprep.subr.mxu0 0.0
    %1317 = vmatpush1.xpose.msra.mxu0 0.0
    %1318 = vmatprep.subr.mxu0 0.0
    %1319 = vmatpush1.xpose.msra.mxu0 0.0
    %1320 = vmatprep.subr.mxu0 0.0
    %1321 = vmatpush1.xpose.msra.mxu0 0.0
    %1322 = vmatprep.subr.mxu0 0.0
    %1323 = vmatpush1.xpose.msra.mxu0 0.0
    %1324 = vmatprep.subr.mxu0 0.0
    %1325 = vmatpush1.xpose.msra.mxu0 0.0
    %1326 = vmatprep.subr.mxu0 0.0
    %1327 = vmatpush1.xpose.msra.mxu0 0.0
    %1328 = vmatprep.subr.mxu0 0.0
    %1329 = vmatpush1.xpose.msra.mxu0 0.0
    %1330 = vmatprep.mubr.f32.mxu0 %v252
    %1331 = vmatmul.mubr.f32.gmra.mrb[0].mxu0 %v244
    %v1332 = vpop.f32.mrb[0].mxu0
    %v1333 = vadd.f32 %v1263, %v1332
    %v1334 = vpop.f32.mrb[0].mxu0
    %1335 = vdwg.mxu0
    %1336 = vmatprep.subr.mxu0 %v77
    %1337 = vmatpush1.xpose.msra.mxu0 %v76
    %1338 = vmatprep.subr.mxu0 %v109
    %1339 = vmatpush1.xpose.msra.mxu0 %v108
    %1340 = vmatprep.subr.mxu0 0.0
    %1341 = vmatpush1.xpose.msra.mxu0 0.0
    %1342 = vmatprep.subr.mxu0 0.0
    %1343 = vmatpush1.xpose.msra.mxu0 0.0
    %1344 = vmatprep.subr.mxu0 0.0
    %1345 = vmatpush1.xpose.msra.mxu0 0.0
    %1346 = vmatprep.subr.mxu0 0.0
    %1347 = vmatpush1.xpose.msra.mxu0 0.0
    %1348 = vmatprep.subr.mxu0 0.0
    %1349 = vmatpush1.xpose.msra.mxu0 0.0
    %1350 = vmatprep.subr.mxu0 0.0
    %1351 = vmatpush1.xpose.msra.mxu0 0.0
    %1352 = vmatprep.subr.mxu0 0.0
    %1353 = vmatpush1.xpose.msra.mxu0 0.0
    %1354 = vmatprep.subr.mxu0 0.0
    %1355 = vmatpush1.xpose.msra.mxu0 0.0
    %1356 = vmatprep.subr.mxu0 0.0
    %1357 = vmatpush1.xpose.msra.mxu0 0.0
    %1358 = vmatprep.subr.mxu0 0.0
    %1359 = vmatpush1.xpose.msra.mxu0 0.0
    %1360 = vmatprep.subr.mxu0 0.0
    %1361 = vmatpush1.xpose.msra.mxu0 0.0
    %1362 = vmatprep.subr.mxu0 0.0
    %1363 = vmatpush1.xpose.msra.mxu0 0.0
    %1364 = vmatprep.subr.mxu0 0.0
    %1365 = vmatpush1.xpose.msra.mxu0 0.0
    %1366 = vmatprep.subr.mxu0 0.0
    %1367 = vmatpush1.xpose.msra.mxu0 0.0
    %1368 = vmatprep.subr.mxu0 0.0
    %1369 = vmatpush1.xpose.msra.mxu0 0.0
    %1370 = vmatprep.subr.mxu0 0.0
    %1371 = vmatpush1.xpose.msra.mxu0 0.0
    %1372 = vmatprep.subr.mxu0 0.0
    %1373 = vmatpush1.xpose.msra.mxu0 0.0
    %1374 = vmatprep.subr.mxu0 0.0
    %1375 = vmatpush1.xpose.msra.mxu0 0.0
    %1376 = vmatprep.subr.mxu0 0.0
    %1377 = vmatpush1.xpose.msra.mxu0 0.0
    %1378 = vmatprep.subr.mxu0 0.0
    %1379 = vmatpush1.xpose.msra.mxu0 0.0
    %1380 = vmatprep.subr.mxu0 0.0
    %1381 = vmatpush1.xpose.msra.mxu0 0.0
    %1382 = vmatprep.subr.mxu0 0.0
    %1383 = vmatpush1.xpose.msra.mxu0 0.0
    %1384 = vmatprep.subr.mxu0 0.0
    %1385 = vmatpush1.xpose.msra.mxu0 0.0
    %1386 = vmatprep.subr.mxu0 0.0
    %1387 = vmatpush1.xpose.msra.mxu0 0.0
    %1388 = vmatprep.subr.mxu0 0.0
    %1389 = vmatpush1.xpose.msra.mxu0 0.0
    %1390 = vmatprep.subr.mxu0 0.0
    %1391 = vmatpush1.xpose.msra.mxu0 0.0
    %1392 = vmatprep.subr.mxu0 0.0
    %1393 = vmatpush1.xpose.msra.mxu0 0.0
    %1394 = vmatprep.subr.mxu0 0.0
    %1395 = vmatpush1.xpose.msra.mxu0 0.0
    %1396 = vmatprep.subr.mxu0 0.0
    %1397 = vmatpush1.xpose.msra.mxu0 0.0
    %1398 = vmatprep.subr.mxu0 0.0
    %1399 = vmatpush1.xpose.msra.mxu0 0.0
    %1400 = vmatprep.mubr.f32.mxu0 %v253
    %1401 = vmatmul.mubr.f32.gmra.mrb[0].mxu0 %v251
    %v1402 = vpop.f32.mrb[0].mxu0
    %v1403 = vadd.f32 %v1333, %v1402
    %v1404 = vpop.f32.mrb[0].mxu0
    %1405 = vdwg.mxu0
    %v1406 = vadd.f32 %v1403, %v1403
    %v1407 = vmax.f32 %v1406, 0.0
    %vm1408 = vcmask 74752
    %1409 = vst.msk [vmem:[#allocation7] sm:$0x3] %vm1408, %v1407
    // Predicated region
    $region18: #{model_forward.1} parent=1 // pred_check
      _
    $region19: #{model_forward.1} parent=1 // pred_check_branch
      %1411 = sbr.rel (0) target = $region21
    $region20: #{model_forward.1} parent=1 // pred_region
      %s1413 = ssub.s32 32, 32
      %1414 = vsyncadd [#allocation4], %s1413
      %s1416 = sshll.u32 [#allocation7], 4
      %s1417 = int_to_ptr.vmem [resolvable:$true] %s1416
      %1419 = dma.vmem_to_hbm [thread:$0]  %s1417, 32, %s2, [#allocation4]
    $region21: #{model_forward.1} parent=1 // pred_fallthru
      _
    // Predicated region
    $region22: #{model_forward.1} parent=1 // pred_check
      _
    $region23: #{model_forward.1} parent=1 // pred_check_branch
      %1421 = sbr.rel (0) target = $region25
    $region24: #{model_forward.1} parent=1 // pred_region
      %1422 = dma.done [#allocation4], 32
    $region25: #{model_forward.1} parent=1 // pred_fallthru
      _
    %1423 = vsyncpa [#allocation3], 1
    %1424 = vsyncpa [#allocation6], 1
    %1425 = vsyncpa [#allocation4], 1

</llo_original>
